<compile_context>
chip_gen: v6e
topology: v6e:2x2x1
jax: 0.10.0
libtpu: 0.0.40
codegen_flags: <defaults>
</compile_context>

<pallas_src>
import functools

import jax
import jax.numpy as jnp
from jax.experimental import pallas as pl
from jax.experimental.pallas import tpu as pltpu

LANE = 128
_BN_EPS = 1e-5


# ----------------------------------------------------------------------------- kernel
def _make_net_kernel(n_blocks: int):
    """Kernel refs:
      x_ref     : [B, P_in]              f32, zero-padded activations (VMEM)
      w_in_ref  : [P_in, P_h]            w_dtype (VMEM)
      b_main_ref: [1 + 2*n_blocks, P_h]  f32 biases: [b_in, (b1', b2)*n_blocks] (VMEM)
      w_hid_hbm : [max(1,2*n_blocks), P_h, P_h]  w_dtype, HBM (manual DMA)
      w_out_ref : [P_h, P_out]           w_dtype (VMEM)
      b_out_ref : [1, P_out]             f32 (VMEM)
      out_ref   : [B, P_out]             f32 (VMEM)
      wbuf      : [2, P_h, P_h]          w_dtype double-buffer scratch
      sem       : DMA semaphores (2,)
    """
    n_hidden = 2 * n_blocks

    def kernel(x_ref, w_in_ref, b_main_ref, w_hid_hbm, w_out_ref, b_out_ref,
               out_ref, wbuf, sem):
        w_dtype = wbuf.dtype

        def start_fetch(k):
            pltpu.make_async_copy(w_hid_hbm.at[k], wbuf.at[k & 1],
                                  sem.at[k & 1]).start()

        def wait_fetch(k):
            pltpu.make_async_copy(w_hid_hbm.at[k], wbuf.at[k & 1],
                                  sem.at[k & 1]).wait()

        # Kick off the first hidden-weight DMA so it overlaps the input matmul.
        if n_hidden > 0:
            start_fetch(0)

        # Input linear (activations cast to weight dtype only at the MXU input).
        h = (jnp.dot(x_ref[...].astype(w_dtype), w_in_ref[...],
                     preferred_element_type=jnp.float32)
             + b_main_ref[0:1, :])

        for blk in range(n_blocks):
            k1 = 2 * blk
            k2 = k1 + 1

            # BatchNorm1d: training-mode batch stats, biased variance, f32.
            # (gamma/beta already folded into w1'/b1' on the host.)
            mean = jnp.mean(h, axis=0, keepdims=True)
            d = h - mean
            var = jnp.mean(d * d, axis=0, keepdims=True)
            hn = d * jax.lax.rsqrt(var + _BN_EPS)

            # Linear 1 (wait current weight, prefetch next into the other slot).
            wait_fetch(k1)
            if k1 + 1 < n_hidden:
                start_fetch(k1 + 1)
            z = (jnp.dot(hn.astype(w_dtype), wbuf[k1 & 1],
                         preferred_element_type=jnp.float32)
                 + b_main_ref[1 + k1:2 + k1, :])
            z = z * jax.nn.sigmoid(z)          # SiLU (EUP slot; free under MXU slack)

            # Linear 2
            wait_fetch(k2)
            if k2 + 1 < n_hidden:
                start_fetch(k2 + 1)
            z = (jnp.dot(z.astype(w_dtype), wbuf[k2 & 1],
                         preferred_element_type=jnp.float32)
                 + b_main_ref[1 + k2:2 + k2, :])

            # Skip connection + SiLU (f32).
            h = h + z
            h = h * jax.nn.sigmoid(h)

        out = (jnp.dot(h.astype(w_dtype), w_out_ref[...],
                       preferred_element_type=jnp.float32)
               + b_out_ref[...])
        out_ref[...] = out.astype(out_ref.dtype)

    return kernel


# ----------------------------------------------------------------------------- host-side packing
def _round_up(n, m):
    return -(-n // m) * m


def _pad_to(a, shape):
    pads = [(0, t - s) for s, t in zip(a.shape, shape)]
    return jnp.pad(a, pads)


def pack_params(params, n_blocks: int, w_dtype=jnp.bfloat16):
    """Fold BN gamma/beta into the following Linear, pad per-matrix, and split
    into: w_in [P_in,P_h], w_hid [2n,P_h,P_h], w_out [P_h,P_out],
          b_main [1+2n,P_h], b_out [1,P_out].
    `params` layout (weights already [in, out]):
        [w_in, b_in, *(gamma, beta, w1, b1, w2, b2) * n_blocks, w_out, b_out]
    """
    w_in, b_in = params[0], params[1]
    f_in, h = w_in.shape
    p_in = _round_up(f_in, LANE)
    p_h = _round_up(h, LANE)

    idx = 2
    hid_ws, hid_bs = [], []
    for _ in range(n_blocks):
        g, beta, w1, b1, w2, b2 = params[idx:idx + 6]
        idx += 6
        g = g.reshape(-1)
        beta = beta.reshape(-1)
        w1f = g[:, None] * w1                      # fold gamma into weight rows
        b1f = beta @ w1 + b1.reshape(-1)           # fold beta into bias
        hid_ws += [w1f, w2]
        hid_bs += [b1f, b2.reshape(-1)]

    w_out, b_out = params[idx], params[idx + 1]
    n_out = w_out.shape[1]
    p_out = _round_up(n_out, LANE)

    w_in_p = _pad_to(w_in.astype(jnp.float32), (p_in, p_h)).astype(w_dtype)
    if hid_ws:
        w_hid_p = jnp.stack(
            [_pad_to(w.astype(jnp.float32), (p_h, p_h)) for w in hid_ws]
        ).astype(w_dtype)
    else:  # dummy (never read by the kernel)
        w_hid_p = jnp.zeros((1, p_h, p_h), w_dtype)
    w_out_p = _pad_to(w_out.astype(jnp.float32), (p_h, p_out)).astype(w_dtype)

    b_main = jnp.stack(
        [_pad_to(b_in.reshape(-1).astype(jnp.float32), (p_h,))]
        + [_pad_to(b.astype(jnp.float32), (p_h,)) for b in hid_bs])
    b_out_p = _pad_to(b_out.reshape(-1).astype(jnp.float32), (p_out,)).reshape(1, p_out)

    return dict(w_in=w_in_p, w_hid=w_hid_p, w_out=w_out_p,
                b_main=b_main, b_out=b_out_p)


def _vmem_capacity_bytes():
    try:
        return int(pltpu.get_tpu_info().vmem_capacity_bytes)
    except Exception:
        return 64 * 1024 * 1024   # conservative: v7x per-TensorCore VMEM


# ----------------------------------------------------------------------------- pallas wrapper
def net_forward_pallas(x, packed, n_blocks: int, n_out_features: int):
    """Run the fused Net forward on packed (folded, padded) parameters."""
    B, f_in = x.shape
    p_in, p_h = packed["w_in"].shape
    p_out = packed["w_out"].shape[1]
    w_dtype = packed["w_in"].dtype
    w_bytes = jnp.dtype(w_dtype).itemsize

    x_p = jnp.pad(x.astype(jnp.float32), ((0, 0), (0, p_in - f_in)))

    # Resident VMEM footprint (weights in HBM are NOT counted; only the
    # 2-matrix double buffer is) + headroom for activation temporaries.
    resident = (x_p.size * 4
                + packed["w_in"].size * w_bytes
                + packed["w_out"].size * w_bytes
                + packed["b_main"].size * 4
                + packed["b_out"].size * 4
                + B * p_out * 4                 # output slab
                + 2 * p_h * p_h * w_bytes       # double-buffer scratch
                + 8 * B * p_h * 4)              # h / d / hn / z temporaries
    vmem_cap = _vmem_capacity_bytes()
    vmem_limit = int(min(0.8 * vmem_cap, max(8 * 1024 * 1024, 2 * resident)))

    kernel = _make_net_kernel(n_blocks)
    vmem = pl.BlockSpec(memory_space=pltpu.MemorySpace.VMEM)
    hbm = pl.BlockSpec(memory_space=pl.ANY)

    out = pl.pallas_call(
        kernel,
        out_shape=jax.ShapeDtypeStruct((B, p_out), jnp.float32),
        in_specs=[vmem, vmem, vmem, hbm, vmem, vmem],
        out_specs=vmem,
        scratch_shapes=[pltpu.VMEM((2, p_h, p_h), w_dtype),
                        pltpu.SemaphoreType.DMA((2,))],
        compiler_params=pltpu.CompilerParams(vmem_limit_bytes=vmem_limit),
    )(x_p, packed["w_in"], packed["b_main"], packed["w_hid"],
      packed["w_out"], packed["b_out"])

    # Slice the lane-dense slab back to the true output width.
    return out[:, :n_out_features]


# ----------------------------------------------------------------------------- init + reference
def init_params(key, n_in, n_hidden, n_out, n_blocks):
    """PyTorch-style Linear init (uniform(+-1/sqrt(fan_in))); BN gamma=1, beta=0.
    Weights stored as [in, out] (pre-transposed for the kernel)."""
    params = []

    def linear(key, fan_in, fan_out):
        kw, kb = jax.random.split(key)
        bound = 1.0 / jnp.sqrt(fan_in)
        w = jax.random.uniform(kw, (fan_in, fan_out), jnp.float32, -bound, bound)
        b = jax.random.uniform(kb, (1, fan_out), jnp.float32, -bound, bound)
        return w, b

    keys = jax.random.split(key, 2 + 2 * n_blocks)
    k_iter = iter(keys)

    params.extend(linear(next(k_iter), n_in, n_hidden))
    for _ in range(n_blocks):
        gamma = jnp.ones((1, n_hidden), jnp.float32)
        beta = jnp.zeros((1, n_hidden), jnp.float32)
        w1, b1 = linear(next(k_iter), n_hidden, n_hidden)
        w2, b2 = linear(next(k_iter), n_hidden, n_hidden)
        params.extend([gamma, beta, w1, b1, w2, b2])
    params.extend(linear(keys[-1], n_hidden, n_out))
    return params


def net_forward_reference(x, params, n_blocks):
    """Pure-JAX f32 reference (un-folded, un-padded) for correctness checking."""
    w_in, b_in = params[0], params[1]
    idx = 2
    h = x @ w_in + b_in
    for _ in range(n_blocks):
        g, beta, w1, b1, w2, b2 = params[idx:idx + 6]
        idx += 6
        mean = jnp.mean(h, axis=0, keepdims=True)
        var = jnp.mean((h - mean) ** 2, axis=0, keepdims=True)
        hn = (h - mean) / jnp.sqrt(var + _BN_EPS) * g + beta
        z = hn @ w1 + b1
        z = z * jax.nn.sigmoid(z)
        z = z @ w2 + b2
        h = h + z
        h = h * jax.nn.sigmoid(h)
    w_out, b_out = params[idx], params[idx + 1]
    return h @ w_out + b_out


# ----------------------------------------------------------------------------- main
if __name__ == "__main__":
    # Small shapes consistent with the module's forward: 2D input [batch, in_features].
    B, F_IN, H, N_BLOCKS, N_OUT = 8, 16, 32, 2, 4

    key = jax.random.PRNGKey(0)
    kx, kp = jax.random.split(key)
    x = jax.random.normal(kx, (B, F_IN), jnp.float32)
    params = init_params(kp, F_IN, H, N_OUT, N_BLOCKS)

    fwd = jax.jit(functools.partial(net_forward_pallas,
                                    n_blocks=N_BLOCKS, n_out_features=N_OUT))
    ref = net_forward_reference(x, params, N_BLOCKS)

    # f32-weight path: exact semantics check (tight tolerance).
    packed_f32 = pack_params(params, N_BLOCKS, w_dtype=jnp.float32)
    out_f32 = jax.block_until_ready(fwd(x, packed_f32))
    assert out_f32.shape == (B, N_OUT), out_f32.shape
    assert jnp.allclose(out_f32, ref, atol=1e-4, rtol=1e-4), (
        f"f32 max abs err {jnp.max(jnp.abs(out_f32 - ref))}")

    # bf16-weight path (production config: half the weight DMA, native MXU rate).
    packed_bf16 = pack_params(params, N_BLOCKS, w_dtype=jnp.bfloat16)
    out_bf16 = jax.block_until_ready(fwd(x, packed_bf16))
    assert out_bf16.shape == (B, N_OUT), out_bf16.shape
    assert jnp.allclose(out_bf16, ref, atol=1e-1, rtol=1e-1), (
        f"bf16 max abs err {jnp.max(jnp.abs(out_bf16 - ref))}")

    print("KERNEL_OK")
</pallas_src>

<mosaic_0001>
module attributes {stable_mosaic.version = 11 : i64} {
  func.func @kernel(%arg0: memref<8x128xf32, #tpu.memory_space<vmem>>, %arg1: memref<128x128xf32, #tpu.memory_space<vmem>>, %arg2: memref<5x128xf32, #tpu.memory_space<vmem>>, %arg3: memref<4x128x128xf32, #tpu.memory_space<any>>, %arg4: memref<128x128xf32, #tpu.memory_space<vmem>>, %arg5: memref<1x128xf32, #tpu.memory_space<vmem>>, %arg6: memref<8x128xf32, #tpu.memory_space<vmem>>, %arg7: memref<2x128x128xf32, #tpu.memory_space<vmem>>, %arg8: memref<2x!tpu.dma_semaphore, #tpu.memory_space<semaphore_mem>>) attributes {dimension_semantics = [], scalar_prefetch = 0 : i64, scratch_operands = 2 : i64, tpu.core_type = #tpu.core_type<tc>} {
    %c0_i32 = arith.constant 0 : i32
    %c0_i32_0 = arith.constant 0 : i32
    %c0_i32_1 = arith.constant 0 : i32
    %c0_i32_2 = arith.constant 0 : i32
    %c0_i32_3 = arith.constant 0 : i32
    %0 = tpu.memref_slice %arg3[%c0_i32, %c0_i32_2, %c0_i32_3] : memref<4x128x128xf32, #tpu.memory_space<any>> -> memref<1x128x128xf32, #tpu.memory_space<any>>
    %1 = tpu.memref_squeeze %0 : memref<1x128x128xf32, #tpu.memory_space<any>> -> memref<128x128xf32, #tpu.memory_space<any>>
    %c0_i32_4 = arith.constant 0 : i32
    %c0_i32_5 = arith.constant 0 : i32
    %2 = tpu.memref_slice %arg7[%c0_i32_0, %c0_i32_4, %c0_i32_5] : memref<2x128x128xf32, #tpu.memory_space<vmem>> -> memref<1x128x128xf32, #tpu.memory_space<vmem>>
    %3 = tpu.memref_squeeze %2 : memref<1x128x128xf32, #tpu.memory_space<vmem>> -> memref<128x128xf32, #tpu.memory_space<vmem>>
    %4 = tpu.memref_slice %arg8[%c0_i32_1] : memref<2x!tpu.dma_semaphore, #tpu.memory_space<semaphore_mem>> -> memref<1x!tpu.dma_semaphore, #tpu.memory_space<semaphore_mem>>
    %5 = tpu.memref_squeeze %4 : memref<1x!tpu.dma_semaphore, #tpu.memory_space<semaphore_mem>> -> memref<!tpu.dma_semaphore, #tpu.memory_space<semaphore_mem>>
    tpu.enqueue_dma source(%1 : memref<128x128xf32, #tpu.memory_space<any>>) target(%3 : memref<128x128xf32, #tpu.memory_space<vmem>>) target_semaphore(%5 : memref<!tpu.dma_semaphore, #tpu.memory_space<semaphore_mem>>)
    %c0 = arith.constant 0 : index
    %c0_6 = arith.constant 0 : index
    %6 = vector.load %arg0[%c0, %c0_6] : memref<8x128xf32, #tpu.memory_space<vmem>>, vector<8x128xf32>
    %c0_7 = arith.constant 0 : index
    %c0_8 = arith.constant 0 : index
    %7 = vector.load %arg1[%c0_7, %c0_8] : memref<128x128xf32, #tpu.memory_space<vmem>>, vector<128x128xf32>
    %cst = arith.constant dense<0.000000e+00> : vector<8x128xf32>
    %8 = tpu.matmul %6, %7, %cst {dimension_numbers = #tpu.dot_dimension_numbers<[1], [0], [0], [1], [0, 0, 1, 1], [], []>} : vector<8x128xf32>, vector<128x128xf32>, vector<8x128xf32> -> vector<8x128xf32>
    %c0_9 = arith.constant 0 : index
    %c0_10 = arith.constant 0 : index
    %9 = vector.load %arg2[%c0_9, %c0_10] : memref<5x128xf32, #tpu.memory_space<vmem>>, vector<1x128xf32>
    %10 = vector.broadcast %9 : vector<1x128xf32> to vector<8x128xf32>
    %11 = arith.addf %8, %10 : vector<8x128xf32>
    %cst_11 = arith.constant dense<0.000000e+00> : vector<128xf32>
    %12 = vector.multi_reduction <add>, %11, %cst_11 [0] : vector<8x128xf32> to vector<128xf32>
    %13 = vector.shape_cast %12 : vector<128xf32> to vector<1x128xf32>
    %cst_12 = arith.constant 8.000000e+00 : f32
    %14 = vector.broadcast %cst_12 : f32 to vector<1x128xf32>
    %15 = arith.divf %13, %14 : vector<1x128xf32>
    %16 = vector.broadcast %15 : vector<1x128xf32> to vector<8x128xf32>
    %17 = arith.subf %11, %16 : vector<8x128xf32>
    %18 = arith.mulf %17, %17 : vector<8x128xf32>
    %cst_13 = arith.constant dense<0.000000e+00> : vector<128xf32>
    %19 = vector.multi_reduction <add>, %18, %cst_13 [0] : vector<8x128xf32> to vector<128xf32>
    %20 = vector.shape_cast %19 : vector<128xf32> to vector<1x128xf32>
    %cst_14 = arith.constant 8.000000e+00 : f32
    %21 = vector.broadcast %cst_14 : f32 to vector<1x128xf32>
    %22 = arith.divf %20, %21 : vector<1x128xf32>
    %cst_15 = arith.constant 9.99999974E-6 : f32
    %23 = vector.broadcast %cst_15 : f32 to vector<1x128xf32>
    %24 = arith.addf %22, %23 : vector<1x128xf32>
    %25 = math.rsqrt %24 : vector<1x128xf32>
    %26 = vector.broadcast %25 : vector<1x128xf32> to vector<8x128xf32>
    %27 = arith.mulf %17, %26 : vector<8x128xf32>
    %c0_i32_16 = arith.constant 0 : i32
    %c0_i32_17 = arith.constant 0 : i32
    %c0_i32_18 = arith.constant 0 : i32
    %c0_i32_19 = arith.constant 0 : i32
    %c0_i32_20 = arith.constant 0 : i32
    %28 = tpu.memref_slice %arg3[%c0_i32_16, %c0_i32_19, %c0_i32_20] : memref<4x128x128xf32, #tpu.memory_space<any>> -> memref<1x128x128xf32, #tpu.memory_space<any>>
    %29 = tpu.memref_squeeze %28 : memref<1x128x128xf32, #tpu.memory_space<any>> -> memref<128x128xf32, #tpu.memory_space<any>>
    %c0_i32_21 = arith.constant 0 : i32
    %c0_i32_22 = arith.constant 0 : i32
    %30 = tpu.memref_slice %arg7[%c0_i32_17, %c0_i32_21, %c0_i32_22] : memref<2x128x128xf32, #tpu.memory_space<vmem>> -> memref<1x128x128xf32, #tpu.memory_space<vmem>>
    %31 = tpu.memref_squeeze %30 : memref<1x128x128xf32, #tpu.memory_space<vmem>> -> memref<128x128xf32, #tpu.memory_space<vmem>>
    %32 = tpu.memref_slice %arg8[%c0_i32_18] : memref<2x!tpu.dma_semaphore, #tpu.memory_space<semaphore_mem>> -> memref<1x!tpu.dma_semaphore, #tpu.memory_space<semaphore_mem>>
    %33 = tpu.memref_squeeze %32 : memref<1x!tpu.dma_semaphore, #tpu.memory_space<semaphore_mem>> -> memref<!tpu.dma_semaphore, #tpu.memory_space<semaphore_mem>>
    tpu.wait_dma2 semaphore(%33 : memref<!tpu.dma_semaphore, #tpu.memory_space<semaphore_mem>>) src(%29 : memref<128x128xf32, #tpu.memory_space<any>>) dst(%31 : memref<128x128xf32, #tpu.memory_space<vmem>>)
    %c1_i32 = arith.constant 1 : i32
    %c1_i32_23 = arith.constant 1 : i32
    %c1_i32_24 = arith.constant 1 : i32
    %c0_i32_25 = arith.constant 0 : i32
    %c0_i32_26 = arith.constant 0 : i32
    %34 = tpu.memref_slice %arg3[%c1_i32, %c0_i32_25, %c0_i32_26] : memref<4x128x128xf32, #tpu.memory_space<any>> -> memref<1x128x128xf32, #tpu.memory_space<any>>
    %35 = tpu.memref_squeeze %34 : memref<1x128x128xf32, #tpu.memory_space<any>> -> memref<128x128xf32, #tpu.memory_space<any>>
    %c0_i32_27 = arith.constant 0 : i32
    %c0_i32_28 = arith.constant 0 : i32
    %36 = tpu.memref_slice %arg7[%c1_i32_23, %c0_i32_27, %c0_i32_28] : memref<2x128x128xf32, #tpu.memory_space<vmem>> -> memref<1x128x128xf32, #tpu.memory_space<vmem>>
    %37 = tpu.memref_squeeze %36 : memref<1x128x128xf32, #tpu.memory_space<vmem>> -> memref<128x128xf32, #tpu.memory_space<vmem>>
    %38 = tpu.memref_slice %arg8[%c1_i32_24] : memref<2x!tpu.dma_semaphore, #tpu.memory_space<semaphore_mem>> -> memref<1x!tpu.dma_semaphore, #tpu.memory_space<semaphore_mem>>
    %39 = tpu.memref_squeeze %38 : memref<1x!tpu.dma_semaphore, #tpu.memory_space<semaphore_mem>> -> memref<!tpu.dma_semaphore, #tpu.memory_space<semaphore_mem>>
    tpu.enqueue_dma source(%35 : memref<128x128xf32, #tpu.memory_space<any>>) target(%37 : memref<128x128xf32, #tpu.memory_space<vmem>>) target_semaphore(%39 : memref<!tpu.dma_semaphore, #tpu.memory_space<semaphore_mem>>)
    %c0_29 = arith.constant 0 : index
    %c0_30 = arith.constant 0 : index
    %c0_31 = arith.constant 0 : index
    %40 = vector.load %arg7[%c0_29, %c0_30, %c0_31] : memref<2x128x128xf32, #tpu.memory_space<vmem>>, vector<1x128x128xf32>
    %41 = vector.shape_cast %40 : vector<1x128x128xf32> to vector<128x128xf32>
    %cst_32 = arith.constant dense<0.000000e+00> : vector<8x128xf32>
    %42 = tpu.matmul %27, %41, %cst_32 {dimension_numbers = #tpu.dot_dimension_numbers<[1], [0], [0], [1], [0, 0, 1, 1], [], []>} : vector<8x128xf32>, vector<128x128xf32>, vector<8x128xf32> -> vector<8x128xf32>
    %c1 = arith.constant 1 : index
    %c0_33 = arith.constant 0 : index
    %43 = vector.load %arg2[%c1, %c0_33] : memref<5x128xf32, #tpu.memory_space<vmem>>, vector<1x128xf32>
    %44 = vector.broadcast %43 : vector<1x128xf32> to vector<8x128xf32>
    %45 = arith.addf %42, %44 : vector<8x128xf32>
    %46 = arith.negf %45 : vector<8x128xf32>
    %47 = math.exp %46 : vector<8x128xf32>
    %cst_34 = arith.constant 1.000000e+00 : f32
    %48 = vector.broadcast %cst_34 : f32 to vector<8x128xf32>
    %49 = arith.addf %48, %47 : vector<8x128xf32>
    %50 = arith.divf %48, %49 : vector<8x128xf32>
    %51 = arith.mulf %45, %50 : vector<8x128xf32>
    %c1_i32_35 = arith.constant 1 : i32
    %c1_i32_36 = arith.constant 1 : i32
    %c1_i32_37 = arith.constant 1 : i32
    %c0_i32_38 = arith.constant 0 : i32
    %c0_i32_39 = arith.constant 0 : i32
    %52 = tpu.memref_slice %arg3[%c1_i32_35, %c0_i32_38, %c0_i32_39] : memref<4x128x128xf32, #tpu.memory_space<any>> -> memref<1x128x128xf32, #tpu.memory_space<any>>
    %53 = tpu.memref_squeeze %52 : memref<1x128x128xf32, #tpu.memory_space<any>> -> memref<128x128xf32, #tpu.memory_space<any>>
    %c0_i32_40 = arith.constant 0 : i32
    %c0_i32_41 = arith.constant 0 : i32
    %54 = tpu.memref_slice %arg7[%c1_i32_36, %c0_i32_40, %c0_i32_41] : memref<2x128x128xf32, #tpu.memory_space<vmem>> -> memref<1x128x128xf32, #tpu.memory_space<vmem>>
    %55 = tpu.memref_squeeze %54 : memref<1x128x128xf32, #tpu.memory_space<vmem>> -> memref<128x128xf32, #tpu.memory_space<vmem>>
    %56 = tpu.memref_slice %arg8[%c1_i32_37] : memref<2x!tpu.dma_semaphore, #tpu.memory_space<semaphore_mem>> -> memref<1x!tpu.dma_semaphore, #tpu.memory_space<semaphore_mem>>
    %57 = tpu.memref_squeeze %56 : memref<1x!tpu.dma_semaphore, #tpu.memory_space<semaphore_mem>> -> memref<!tpu.dma_semaphore, #tpu.memory_space<semaphore_mem>>
    tpu.wait_dma2 semaphore(%57 : memref<!tpu.dma_semaphore, #tpu.memory_space<semaphore_mem>>) src(%53 : memref<128x128xf32, #tpu.memory_space<any>>) dst(%55 : memref<128x128xf32, #tpu.memory_space<vmem>>)
    %c2_i32 = arith.constant 2 : i32
    %c0_i32_42 = arith.constant 0 : i32
    %c0_i32_43 = arith.constant 0 : i32
    %c0_i32_44 = arith.constant 0 : i32
    %c0_i32_45 = arith.constant 0 : i32
    %58 = tpu.memref_slice %arg3[%c2_i32, %c0_i32_44, %c0_i32_45] : memref<4x128x128xf32, #tpu.memory_space<any>> -> memref<1x128x128xf32, #tpu.memory_space<any>>
    %59 = tpu.memref_squeeze %58 : memref<1x128x128xf32, #tpu.memory_space<any>> -> memref<128x128xf32, #tpu.memory_space<any>>
    %c0_i32_46 = arith.constant 0 : i32
    %c0_i32_47 = arith.constant 0 : i32
    %60 = tpu.memref_slice %arg7[%c0_i32_42, %c0_i32_46, %c0_i32_47] : memref<2x128x128xf32, #tpu.memory_space<vmem>> -> memref<1x128x128xf32, #tpu.memory_space<vmem>>
    %61 = tpu.memref_squeeze %60 : memref<1x128x128xf32, #tpu.memory_space<vmem>> -> memref<128x128xf32, #tpu.memory_space<vmem>>
    %62 = tpu.memref_slice %arg8[%c0_i32_43] : memref<2x!tpu.dma_semaphore, #tpu.memory_space<semaphore_mem>> -> memref<1x!tpu.dma_semaphore, #tpu.memory_space<semaphore_mem>>
    %63 = tpu.memref_squeeze %62 : memref<1x!tpu.dma_semaphore, #tpu.memory_space<semaphore_mem>> -> memref<!tpu.dma_semaphore, #tpu.memory_space<semaphore_mem>>
    tpu.enqueue_dma source(%59 : memref<128x128xf32, #tpu.memory_space<any>>) target(%61 : memref<128x128xf32, #tpu.memory_space<vmem>>) target_semaphore(%63 : memref<!tpu.dma_semaphore, #tpu.memory_space<semaphore_mem>>)
    %c1_48 = arith.constant 1 : index
    %c0_49 = arith.constant 0 : index
    %c0_50 = arith.constant 0 : index
    %64 = vector.load %arg7[%c1_48, %c0_49, %c0_50] : memref<2x128x128xf32, #tpu.memory_space<vmem>>, vector<1x128x128xf32>
    %65 = vector.shape_cast %64 : vector<1x128x128xf32> to vector<128x128xf32>
    %cst_51 = arith.constant dense<0.000000e+00> : vector<8x128xf32>
    %66 = tpu.matmul %51, %65, %cst_51 {dimension_numbers = #tpu.dot_dimension_numbers<[1], [0], [0], [1], [0, 0, 1, 1], [], []>} : vector<8x128xf32>, vector<128x128xf32>, vector<8x128xf32> -> vector<8x128xf32>
    %c2 = arith.constant 2 : index
    %c0_52 = arith.constant 0 : index
    %67 = vector.load %arg2[%c2, %c0_52] : memref<5x128xf32, #tpu.memory_space<vmem>>, vector<1x128xf32>
    %68 = vector.broadcast %67 : vector<1x128xf32> to vector<8x128xf32>
    %69 = arith.addf %66, %68 : vector<8x128xf32>
    %70 = arith.addf %11, %69 : vector<8x128xf32>
    %71 = arith.negf %70 : vector<8x128xf32>
    %72 = math.exp %71 : vector<8x128xf32>
    %cst_53 = arith.constant 1.000000e+00 : f32
    %73 = vector.broadcast %cst_53 : f32 to vector<8x128xf32>
    %74 = arith.addf %73, %72 : vector<8x128xf32>
    %75 = arith.divf %73, %74 : vector<8x128xf32>
    %76 = arith.mulf %70, %75 : vector<8x128xf32>
    %cst_54 = arith.constant dense<0.000000e+00> : vector<128xf32>
    %77 = vector.multi_reduction <add>, %76, %cst_54 [0] : vector<8x128xf32> to vector<128xf32>
    %78 = vector.shape_cast %77 : vector<128xf32> to vector<1x128xf32>
    %cst_55 = arith.constant 8.000000e+00 : f32
    %79 = vector.broadcast %cst_55 : f32 to vector<1x128xf32>
    %80 = arith.divf %78, %79 : vector<1x128xf32>
    %81 = vector.broadcast %80 : vector<1x128xf32> to vector<8x128xf32>
    %82 = arith.subf %76, %81 : vector<8x128xf32>
    %83 = arith.mulf %82, %82 : vector<8x128xf32>
    %cst_56 = arith.constant dense<0.000000e+00> : vector<128xf32>
    %84 = vector.multi_reduction <add>, %83, %cst_56 [0] : vector<8x128xf32> to vector<128xf32>
    %85 = vector.shape_cast %84 : vector<128xf32> to vector<1x128xf32>
    %cst_57 = arith.constant 8.000000e+00 : f32
    %86 = vector.broadcast %cst_57 : f32 to vector<1x128xf32>
    %87 = arith.divf %85, %86 : vector<1x128xf32>
    %cst_58 = arith.constant 9.99999974E-6 : f32
    %88 = vector.broadcast %cst_58 : f32 to vector<1x128xf32>
    %89 = arith.addf %87, %88 : vector<1x128xf32>
    %90 = math.rsqrt %89 : vector<1x128xf32>
    %91 = vector.broadcast %90 : vector<1x128xf32> to vector<8x128xf32>
    %92 = arith.mulf %82, %91 : vector<8x128xf32>
    %c2_i32_59 = arith.constant 2 : i32
    %c0_i32_60 = arith.constant 0 : i32
    %c0_i32_61 = arith.constant 0 : i32
    %c0_i32_62 = arith.constant 0 : i32
    %c0_i32_63 = arith.constant 0 : i32
    %93 = tpu.memref_slice %arg3[%c2_i32_59, %c0_i32_62, %c0_i32_63] : memref<4x128x128xf32, #tpu.memory_space<any>> -> memref<1x128x128xf32, #tpu.memory_space<any>>
    %94 = tpu.memref_squeeze %93 : memref<1x128x128xf32, #tpu.memory_space<any>> -> memref<128x128xf32, #tpu.memory_space<any>>
    %c0_i32_64 = arith.constant 0 : i32
    %c0_i32_65 = arith.constant 0 : i32
    %95 = tpu.memref_slice %arg7[%c0_i32_60, %c0_i32_64, %c0_i32_65] : memref<2x128x128xf32, #tpu.memory_space<vmem>> -> memref<1x128x128xf32, #tpu.memory_space<vmem>>
    %96 = tpu.memref_squeeze %95 : memref<1x128x128xf32, #tpu.memory_space<vmem>> -> memref<128x128xf32, #tpu.memory_space<vmem>>
    %97 = tpu.memref_slice %arg8[%c0_i32_61] : memref<2x!tpu.dma_semaphore, #tpu.memory_space<semaphore_mem>> -> memref<1x!tpu.dma_semaphore, #tpu.memory_space<semaphore_mem>>
    %98 = tpu.memref_squeeze %97 : memref<1x!tpu.dma_semaphore, #tpu.memory_space<semaphore_mem>> -> memref<!tpu.dma_semaphore, #tpu.memory_space<semaphore_mem>>
    tpu.wait_dma2 semaphore(%98 : memref<!tpu.dma_semaphore, #tpu.memory_space<semaphore_mem>>) src(%94 : memref<128x128xf32, #tpu.memory_space<any>>) dst(%96 : memref<128x128xf32, #tpu.memory_space<vmem>>)
    %c3_i32 = arith.constant 3 : i32
    %c1_i32_66 = arith.constant 1 : i32
    %c1_i32_67 = arith.constant 1 : i32
    %c0_i32_68 = arith.constant 0 : i32
    %c0_i32_69 = arith.constant 0 : i32
    %99 = tpu.memref_slice %arg3[%c3_i32, %c0_i32_68, %c0_i32_69] : memref<4x128x128xf32, #tpu.memory_space<any>> -> memref<1x128x128xf32, #tpu.memory_space<any>>
    %100 = tpu.memref_squeeze %99 : memref<1x128x128xf32, #tpu.memory_space<any>> -> memref<128x128xf32, #tpu.memory_space<any>>
    %c0_i32_70 = arith.constant 0 : i32
    %c0_i32_71 = arith.constant 0 : i32
    %101 = tpu.memref_slice %arg7[%c1_i32_66, %c0_i32_70, %c0_i32_71] : memref<2x128x128xf32, #tpu.memory_space<vmem>> -> memref<1x128x128xf32, #tpu.memory_space<vmem>>
    %102 = tpu.memref_squeeze %101 : memref<1x128x128xf32, #tpu.memory_space<vmem>> -> memref<128x128xf32, #tpu.memory_space<vmem>>
    %103 = tpu.memref_slice %arg8[%c1_i32_67] : memref<2x!tpu.dma_semaphore, #tpu.memory_space<semaphore_mem>> -> memref<1x!tpu.dma_semaphore, #tpu.memory_space<semaphore_mem>>
    %104 = tpu.memref_squeeze %103 : memref<1x!tpu.dma_semaphore, #tpu.memory_space<semaphore_mem>> -> memref<!tpu.dma_semaphore, #tpu.memory_space<semaphore_mem>>
    tpu.enqueue_dma source(%100 : memref<128x128xf32, #tpu.memory_space<any>>) target(%102 : memref<128x128xf32, #tpu.memory_space<vmem>>) target_semaphore(%104 : memref<!tpu.dma_semaphore, #tpu.memory_space<semaphore_mem>>)
    %c0_72 = arith.constant 0 : index
    %c0_73 = arith.constant 0 : index
    %c0_74 = arith.constant 0 : index
    %105 = vector.load %arg7[%c0_72, %c0_73, %c0_74] : memref<2x128x128xf32, #tpu.memory_space<vmem>>, vector<1x128x128xf32>
    %106 = vector.shape_cast %105 : vector<1x128x128xf32> to vector<128x128xf32>
    %cst_75 = arith.constant dense<0.000000e+00> : vector<8x128xf32>
    %107 = tpu.matmul %92, %106, %cst_75 {dimension_numbers = #tpu.dot_dimension_numbers<[1], [0], [0], [1], [0, 0, 1, 1], [], []>} : vector<8x128xf32>, vector<128x128xf32>, vector<8x128xf32> -> vector<8x128xf32>
    %c3 = arith.constant 3 : index
    %c0_76 = arith.constant 0 : index
    %108 = vector.load %arg2[%c3, %c0_76] : memref<5x128xf32, #tpu.memory_space<vmem>>, vector<1x128xf32>
    %109 = vector.broadcast %108 : vector<1x128xf32> to vector<8x128xf32>
    %110 = arith.addf %107, %109 : vector<8x128xf32>
    %111 = arith.negf %110 : vector<8x128xf32>
    %112 = math.exp %111 : vector<8x128xf32>
    %cst_77 = arith.constant 1.000000e+00 : f32
    %113 = vector.broadcast %cst_77 : f32 to vector<8x128xf32>
    %114 = arith.addf %113, %112 : vector<8x128xf32>
    %115 = arith.divf %113, %114 : vector<8x128xf32>
    %116 = arith.mulf %110, %115 : vector<8x128xf32>
    %c3_i32_78 = arith.constant 3 : i32
    %c1_i32_79 = arith.constant 1 : i32
    %c1_i32_80 = arith.constant 1 : i32
    %c0_i32_81 = arith.constant 0 : i32
    %c0_i32_82 = arith.constant 0 : i32
    %117 = tpu.memref_slice %arg3[%c3_i32_78, %c0_i32_81, %c0_i32_82] : memref<4x128x128xf32, #tpu.memory_space<any>> -> memref<1x128x128xf32, #tpu.memory_space<any>>
    %118 = tpu.memref_squeeze %117 : memref<1x128x128xf32, #tpu.memory_space<any>> -> memref<128x128xf32, #tpu.memory_space<any>>
    %c0_i32_83 = arith.constant 0 : i32
    %c0_i32_84 = arith.constant 0 : i32
    %119 = tpu.memref_slice %arg7[%c1_i32_79, %c0_i32_83, %c0_i32_84] : memref<2x128x128xf32, #tpu.memory_space<vmem>> -> memref<1x128x128xf32, #tpu.memory_space<vmem>>
    %120 = tpu.memref_squeeze %119 : memref<1x128x128xf32, #tpu.memory_space<vmem>> -> memref<128x128xf32, #tpu.memory_space<vmem>>
    %121 = tpu.memref_slice %arg8[%c1_i32_80] : memref<2x!tpu.dma_semaphore, #tpu.memory_space<semaphore_mem>> -> memref<1x!tpu.dma_semaphore, #tpu.memory_space<semaphore_mem>>
    %122 = tpu.memref_squeeze %121 : memref<1x!tpu.dma_semaphore, #tpu.memory_space<semaphore_mem>> -> memref<!tpu.dma_semaphore, #tpu.memory_space<semaphore_mem>>
    tpu.wait_dma2 semaphore(%122 : memref<!tpu.dma_semaphore, #tpu.memory_space<semaphore_mem>>) src(%118 : memref<128x128xf32, #tpu.memory_space<any>>) dst(%120 : memref<128x128xf32, #tpu.memory_space<vmem>>)
    %c1_85 = arith.constant 1 : index
    %c0_86 = arith.constant 0 : index
    %c0_87 = arith.constant 0 : index
    %123 = vector.load %arg7[%c1_85, %c0_86, %c0_87] : memref<2x128x128xf32, #tpu.memory_space<vmem>>, vector<1x128x128xf32>
    %124 = vector.shape_cast %123 : vector<1x128x128xf32> to vector<128x128xf32>
    %cst_88 = arith.constant dense<0.000000e+00> : vector<8x128xf32>
    %125 = tpu.matmul %116, %124, %cst_88 {dimension_numbers = #tpu.dot_dimension_numbers<[1], [0], [0], [1], [0, 0, 1, 1], [], []>} : vector<8x128xf32>, vector<128x128xf32>, vector<8x128xf32> -> vector<8x128xf32>
    %c4 = arith.constant 4 : index
    %c0_89 = arith.constant 0 : index
    %126 = vector.load %arg2[%c4, %c0_89] : memref<5x128xf32, #tpu.memory_space<vmem>>, vector<1x128xf32>
    %127 = vector.broadcast %126 : vector<1x128xf32> to vector<8x128xf32>
    %128 = arith.addf %125, %127 : vector<8x128xf32>
    %129 = arith.addf %76, %128 : vector<8x128xf32>
    %130 = arith.negf %129 : vector<8x128xf32>
    %131 = math.exp %130 : vector<8x128xf32>
    %cst_90 = arith.constant 1.000000e+00 : f32
    %132 = vector.broadcast %cst_90 : f32 to vector<8x128xf32>
    %133 = arith.addf %132, %131 : vector<8x128xf32>
    %134 = arith.divf %132, %133 : vector<8x128xf32>
    %135 = arith.mulf %129, %134 : vector<8x128xf32>
    %c0_91 = arith.constant 0 : index
    %c0_92 = arith.constant 0 : index
    %136 = vector.load %arg4[%c0_91, %c0_92] : memref<128x128xf32, #tpu.memory_space<vmem>>, vector<128x128xf32>
    %cst_93 = arith.constant dense<0.000000e+00> : vector<8x128xf32>
    %137 = tpu.matmul %135, %136, %cst_93 {dimension_numbers = #tpu.dot_dimension_numbers<[1], [0], [0], [1], [0, 0, 1, 1], [], []>} : vector<8x128xf32>, vector<128x128xf32>, vector<8x128xf32> -> vector<8x128xf32>
    %c0_94 = arith.constant 0 : index
    %c0_95 = arith.constant 0 : index
    %138 = vector.load %arg5[%c0_94, %c0_95] : memref<1x128xf32, #tpu.memory_space<vmem>>, vector<1x128xf32>
    %139 = vector.broadcast %138 : vector<1x128xf32> to vector<8x128xf32>
    %140 = arith.addf %137, %139 : vector<8x128xf32>
    %c0_96 = arith.constant 0 : index
    %c0_97 = arith.constant 0 : index
    %141 = vector.load %arg6[%c0_96, %c0_97] : memref<8x128xf32, #tpu.memory_space<vmem>>, vector<8x128xf32>
    tpu.vector_store %arg6[%c0_96, %c0_97], %140 {strides = array<i32>} : memref<8x128xf32, #tpu.memory_space<vmem>>, vector<8x128xf32>,
    return
  }
}

</mosaic_0001>

<llo_original>
// kernel: net_forward_pallas.1
$region0: #{net_forward_pallas.1}
  #allocation0 [shape = 'u32[]', space=smem, size = 0x4, offset = 0x4, fixed_abs, tag = 'smem constant byte address 0x4 - core index']
  #allocation1 [shape = 'u32[144,128]{1,0:T(1,128)}', space=vmem, size = 0x12000, scoped, tag = 'internal scratch']
  #allocation2 [shape = 'f32[2,128,128]{2,1,0:T(8,128)}', space=vmem, size = 0x20000, scoped, tag = 'scratch operand']
  #allocation3 [shape = 's32[2]{0}', space=sflag, size = 0x8, scoped, tag = 'scratch operand']
  #allocation8 [shape = 's32[]', space=sflag, size = 0x4, offset = 0, fixed_abs, tag = 'sflag constant byte address 0x0 - dummy sync flag']
  #allocation9 [shape = 's32[]', space=sflag, size = 0x4, offset = 0, fixed_abs, tag = 'sflag constant byte address 0x0 - dummy sync flag']
  #allocation10 [shape = 'u32[]', space=smem, size = 0x4, offset = 0x44, fixed_abs, tag = 'smem constant byte address 0x44 - assertion arg 0']
  #allocation11 [shape = 'u32[]', space=smem, size = 0x4, offset = 0x48, fixed_abs, tag = 'smem constant byte address 0x48 - assertion arg 1']
  #allocation12 [shape = 's32[]', space=sflag, size = 0x4, offset = 0, fixed_abs, tag = 'sflag constant byte address 0x0 - dummy sync flag']
  #allocation13 [shape = 's32[]', space=sflag, size = 0x4, offset = 0, fixed_abs, tag = 'sflag constant byte address 0x0 - dummy sync flag']
  #allocation14 [shape = 's32[]', space=sflag, size = 0x4, offset = 0, fixed_abs, tag = 'sflag constant byte address 0x0 - dummy sync flag']
  #allocation15 [shape = 's32[]', space=sflag, size = 0x4, offset = 0, fixed_abs, tag = 'sflag constant byte address 0x0 - dummy sync flag']
  #allocation16 [shape = 's32[]', space=sflag, size = 0x4, offset = 0, fixed_abs, tag = 'sflag constant byte address 0x0 - dummy sync flag']
  #allocation17 [shape = 's32[]', space=sflag, size = 0x4, offset = 0, fixed_abs, tag = 'sflag constant byte address 0x0 - dummy sync flag']
  %s0 = inlined_call_operand.vmem [shape: f32[8,128], index: 0, kind: input, shape index: {}]
  %s1 = inlined_call_operand.hbm [shape: f32[128,128], index: 1, kind: input, shape index: {}]
  %s2 = inlined_call_operand.vmem [shape: f32[5,128], index: 2, kind: input, shape index: {}]
  %s3 = inlined_call_operand.hbm [shape: f32[4,128,128], index: 3, kind: input, shape index: {}]
  %s4 = inlined_call_operand.hbm [shape: f32[128,128], index: 4, kind: input, shape index: {}]
  %s5 = inlined_call_operand.vmem [shape: f32[1,128], index: 5, kind: input, shape index: {}]
  %s6 = inlined_call_operand.vmem [shape: f32[8,128], index: 6, kind: output, shape index: {}]
  %s7 = sld [smem:[#allocation0]]
  $region54: #{net_forward_pallas.1} parent=0
    _
  %s9 = ssub.s32 1, %s7
  %s10 = scalar_select 0, %s9, %s7
  $region1: #{net_forward_pallas.1} parent=0
    #allocation4 [shape = 'u8[65536]{0}', space=vmem, size = 0x10000, scoped, tag = 'input window, operand 1, single buffered']
    #allocation5 [shape = 's32[1]{0}', space=sflag, size = 0x4, scoped, tag = 'scoped memory for net_forward_pallas.1']
    #allocation6 [shape = 'u8[65536]{0}', space=vmem, size = 0x10000, scoped, tag = 'input window, operand 4, single buffered']
    #allocation7 [shape = 's32[1]{0}', space=sflag, size = 0x4, scoped, tag = 'scoped memory for net_forward_pallas.1']
    %11 = vsyncpa [#allocation5], 0
    %12 = vsyncpa [#allocation7], 0
    // Predicated region
    $region2: #{net_forward_pallas.1} parent=1 // pred_check
      _
    $region3: #{net_forward_pallas.1} parent=1 // pred_check_branch
      %14 = sbr.rel (0) target = $region5
    $region4: #{net_forward_pallas.1} parent=1 // pred_region
      _
    $region5: #{net_forward_pallas.1} parent=1 // pred_fallthru
      _
    // Predicated region
    $region6: #{net_forward_pallas.1} parent=1 // pred_check
      _
    $region7: #{net_forward_pallas.1} parent=1 // pred_check_branch
      %16 = sbr.rel (0) target = $region9
    $region8: #{net_forward_pallas.1} parent=1 // pred_region
      %s18 = ssub.s32 2048, 2048
      %19 = vsyncadd [#allocation5], %s18
      %s20 = sshll.u32 [#allocation4], 4
      %s21 = int_to_ptr.vmem [resolvable:$true] %s20
      %26 = dma.hbm_to_vmem [thread:$0]  %s1, 2048, %s21, [#allocation5], 128, 128, 8
    $region9: #{net_forward_pallas.1} parent=1 // pred_fallthru
      _
    // Predicated region
    $region10: #{net_forward_pallas.1} parent=1 // pred_check
      _
    $region11: #{net_forward_pallas.1} parent=1 // pred_check_branch
      %28 = sbr.rel (0) target = $region13
    $region12: #{net_forward_pallas.1} parent=1 // pred_region
      _
    $region13: #{net_forward_pallas.1} parent=1 // pred_fallthru
      _
    // Predicated region
    $region14: #{net_forward_pallas.1} parent=1 // pred_check
      _
    $region15: #{net_forward_pallas.1} parent=1 // pred_check_branch
      %30 = sbr.rel (0) target = $region17
    $region16: #{net_forward_pallas.1} parent=1 // pred_region
      %s32 = ssub.s32 2048, 2048
      %33 = vsyncadd [#allocation7], %s32
      %s34 = sshll.u32 [#allocation6], 4
      %s35 = int_to_ptr.vmem [resolvable:$true] %s34
      %40 = dma.hbm_to_vmem [thread:$0]  %s4, 2048, %s35, [#allocation7], 128, 128, 8
    $region17: #{net_forward_pallas.1} parent=1 // pred_fallthru
      _
    // Predicated region
    $region18: #{net_forward_pallas.1} parent=1 // pred_check
      _
    $region19: #{net_forward_pallas.1} parent=1 // pred_check_branch
      %42 = sbr.rel (0) target = $region21
    $region20: #{net_forward_pallas.1} parent=1 // pred_region
      _
    $region21: #{net_forward_pallas.1} parent=1 // pred_fallthru
      _
    // Predicated region
    $region22: #{net_forward_pallas.1} parent=1 // pred_check
      _
    $region23: #{net_forward_pallas.1} parent=1 // pred_check_branch
      %44 = sbr.rel (0) target = $region25
    $region24: #{net_forward_pallas.1} parent=1 // pred_region
      %45 = dma.done [#allocation5], 2048
    $region25: #{net_forward_pallas.1} parent=1 // pred_fallthru
      _
    // Predicated region
    $region26: #{net_forward_pallas.1} parent=1 // pred_check
      _
    $region27: #{net_forward_pallas.1} parent=1 // pred_check_branch
      %47 = sbr.rel (0) target = $region29
    $region28: #{net_forward_pallas.1} parent=1 // pred_region
      %48 = dma.done [#allocation7], 2048
    $region29: #{net_forward_pallas.1} parent=1 // pred_fallthru
      _
    // Predicated region
    $region30: #{net_forward_pallas.1} parent=1 // pred_check
      _
    $region31: #{net_forward_pallas.1} parent=1 // pred_check_branch
      %50 = sbr.rel target = $region33
    $region32: #{net_forward_pallas.1} parent=1 // pred_region
      %51 = sst [smem:[#allocation10]] [#allocation9]
      %52 = sst [smem:[#allocation11]] [#allocation8]
    $region33: #{net_forward_pallas.1} parent=1 // pred_fallthru
      _
    %54 = shalt.err (0)
    %s56 = sshll.u32 [#allocation2], 4
    %s57 = int_to_ptr.vmem [resolvable:$true] %s56
    %59 = dma.hbm_to_vmem [thread:$0]  %s3, 2048, %s57, [#allocation3]
    %v60 = vld [vmem:[%s0] sm:$0xff]
    %v61 = vld [vmem:[#allocation4] sm:$0xff]
    %v62 = vld [vmem:[#allocation4 + $0x8] sm:$0xff]
    %v63 = vld [vmem:[#allocation4 + $0x10] sm:$0xff]
    %v64 = vld [vmem:[#allocation4 + $0x18] sm:$0xff]
    %v65 = vld [vmem:[#allocation4 + $0x20] sm:$0xff]
    %v66 = vld [vmem:[#allocation4 + $0x28] sm:$0xff]
    %v67 = vld [vmem:[#allocation4 + $0x30] sm:$0xff]
    %v68 = vld [vmem:[#allocation4 + $0x38] sm:$0xff]
    %v69 = vld [vmem:[#allocation4 + $0x40] sm:$0xff]
    %v70 = vld [vmem:[#allocation4 + $0x48] sm:$0xff]
    %v71 = vld [vmem:[#allocation4 + $0x50] sm:$0xff]
    %v72 = vld [vmem:[#allocation4 + $0x58] sm:$0xff]
    %v73 = vld [vmem:[#allocation4 + $0x60] sm:$0xff]
    %v74 = vld [vmem:[#allocation4 + $0x68] sm:$0xff]
    %v75 = vld [vmem:[#allocation4 + $0x70] sm:$0xff]
    %v76 = vld [vmem:[#allocation4 + $0x78] sm:$0xff]
    %v77 = vld [vmem:[%s2] sm:$0x1]
    %v78 = vlaneseq
    %v79 = vshrl.u32 %v78, 7
    %v80 = vsub.s32 0, %v79
    %v81 = vrot.slane %v77, %v80
    %82 = vmatprep.subr.mxu0 0.0
    %83 = vmatpush1.msra.mxu0 %v76
    %84 = vmatprep.subr.mxu0 0.0
    %85 = vmatpush1.msra.mxu0 %v75
    %86 = vmatprep.subr.mxu0 0.0
    %87 = vmatpush1.msra.mxu0 %v74
    %88 = vmatprep.subr.mxu0 0.0
    %89 = vmatpush1.msra.mxu0 %v73
    %90 = vmatprep.subr.mxu0 0.0
    %91 = vmatpush1.msra.mxu0 %v72
    %92 = vmatprep.subr.mxu0 0.0
    %93 = vmatpush1.msra.mxu0 %v71
    %94 = vmatprep.subr.mxu0 0.0
    %95 = vmatpush1.msra.mxu0 %v70
    %96 = vmatprep.subr.mxu0 0.0
    %97 = vmatpush1.msra.mxu0 %v69
    %98 = vmatprep.subr.mxu0 0.0
    %99 = vmatpush1.msra.mxu0 %v68
    %100 = vmatprep.subr.mxu0 0.0
    %101 = vmatpush1.msra.mxu0 %v67
    %102 = vmatprep.subr.mxu0 0.0
    %103 = vmatpush1.msra.mxu0 %v66
    %104 = vmatprep.subr.mxu0 0.0
    %105 = vmatpush1.msra.mxu0 %v65
    %106 = vmatprep.subr.mxu0 0.0
    %107 = vmatpush1.msra.mxu0 %v64
    %108 = vmatprep.subr.mxu0 0.0
    %109 = vmatpush1.msra.mxu0 %v63
    %110 = vmatprep.subr.mxu0 0.0
    %111 = vmatpush1.msra.mxu0 %v62
    %112 = vmatprep.subr.mxu0 0.0
    %113 = vmatpush1.msra.mxu0 %v61
    %114 = vmatprep.subr.mxu0 0.0
    %115 = vmatpush2.msra.mxu0 0.0
    %116 = vmatprep.subr.mxu0 0.0
    %117 = vmatpush2.msra.mxu0 0.0
    %118 = vmatprep.subr.mxu0 0.0
    %119 = vmatpush2.msra.mxu0 0.0
    %120 = vmatprep.subr.mxu0 0.0
    %121 = vmatpush2.msra.mxu0 0.0
    %122 = vmatprep.subr.mxu0 0.0
    %123 = vmatpush2.msra.mxu0 0.0
    %124 = vmatprep.subr.mxu0 0.0
    %125 = vmatpush2.msra.mxu0 0.0
    %126 = vmatprep.subr.mxu0 0.0
    %127 = vmatpush2.msra.mxu0 0.0
    %128 = vmatprep.subr.mxu0 0.0
    %129 = vmatpush2.msra.mxu0 0.0
    %130 = vmatprep.subr.mxu0 0.0
    %131 = vmatpush2.msra.mxu0 0.0
    %132 = vmatprep.subr.mxu0 0.0
    %133 = vmatpush2.msra.mxu0 0.0
    %134 = vmatprep.subr.mxu0 0.0
    %135 = vmatpush2.msra.mxu0 0.0
    %136 = vmatprep.subr.mxu0 0.0
    %137 = vmatpush2.msra.mxu0 0.0
    %138 = vmatprep.subr.mxu0 0.0
    %139 = vmatpush2.msra.mxu0 0.0
    %140 = vmatprep.subr.mxu0 0.0
    %141 = vmatpush2.msra.mxu0 0.0
    %142 = vmatprep.subr.mxu0 0.0
    %143 = vmatpush2.msra.mxu0 0.0
    %144 = vmatprep.subr.mxu0 0.0
    %145 = vmatpush2.msra.mxu0 0.0
    %146 = vmatprep.mubr.f32.mxu0 0.0
    %147 = vmatmul.mubr.f32.gmra.mxu0 %v60
    %v148 = vpop.f32.mrf.mxu0
    %v149 = vadd.f32 %v81, %v148
    %v150 = vpop.f32.mrf.mxu0
    %151 = vdwg.mxu0
    %v152 = vrot.slane %v149, 4
    %v153 = vadd.f32 %v149, %v152
    %v154 = vrot.slane %v153, 2
    %v155 = vadd.f32 %v153, %v154
    %v156 = vrot.slane %v155, 1
    %v157 = vadd.f32 %v155, %v156
    %v158 = vrcp.pop 8.0
    %v159 = vmul.f32 %v157, %v158
    %v160 = vsub.f32 %v149, %v159
    %v161 = vmul.f32 %v160, %v160
    %v162 = vrot.slane %v161, 4
    %v163 = vadd.f32 %v161, %v162
    %v164 = vrot.slane %v163, 2
    %v165 = vadd.f32 %v163, %v164
    %v166 = vrot.slane %v165, 1
    %v167 = vadd.f32 %v165, %v166
    %v168 = vmul.f32 %v167, %v158
    %v169 = vadd.f32 %v168, 1e-05
    %v170 = vrsqrt.pop %v169
    %v171 = vmul.f32 %v160, %v170
    %s172 = smul.u32 128, 1
    %s173 = sshll.u32 %s172, 4
    %174 = dma.done [#allocation3], %s173
    %s175 = scalar_lea.hbm %s3, 2048
    %s176 = scalar_lea.vmem [#allocation2], 128
    %s177 = scalar_lea.sflag [#allocation3], 1
    // Predicated region
    $region34: #{net_forward_pallas.1} parent=1 // pred_check
      _
    $region35: #{net_forward_pallas.1} parent=1 // pred_check_branch
      %179 = sbr.rel target = $region37
    $region36: #{net_forward_pallas.1} parent=1 // pred_region
      %180 = sst [smem:[#allocation10]] [#allocation13]
      %181 = sst [smem:[#allocation11]] [#allocation12]
    $region37: #{net_forward_pallas.1} parent=1 // pred_fallthru
      _
    %183 = shalt.err (0)
    %s185 = sshll.u32 %s176, 4
    %s186 = int_to_ptr.vmem [resolvable:$true] %s185
    %188 = dma.hbm_to_vmem [thread:$0]  %s175, 2048, %s186, %s177
    %v189 = vld [vmem:[#allocation2] sm:$0xff]
    %v190 = vld [vmem:[#allocation2 + $0x8] sm:$0xff]
    %v191 = vld [vmem:[#allocation2 + $0x10] sm:$0xff]
    %v192 = vld [vmem:[#allocation2 + $0x18] sm:$0xff]
    %v193 = vld [vmem:[#allocation2 + $0x20] sm:$0xff]
    %v194 = vld [vmem:[#allocation2 + $0x28] sm:$0xff]
    %v195 = vld [vmem:[#allocation2 + $0x30] sm:$0xff]
    %v196 = vld [vmem:[#allocation2 + $0x38] sm:$0xff]
    %v197 = vld [vmem:[#allocation2 + $0x40] sm:$0xff]
    %v198 = vld [vmem:[#allocation2 + $0x48] sm:$0xff]
    %v199 = vld [vmem:[#allocation2 + $0x50] sm:$0xff]
    %v200 = vld [vmem:[#allocation2 + $0x58] sm:$0xff]
    %v201 = vld [vmem:[#allocation2 + $0x60] sm:$0xff]
    %v202 = vld [vmem:[#allocation2 + $0x68] sm:$0xff]
    %v203 = vld [vmem:[#allocation2 + $0x70] sm:$0xff]
    %v204 = vld [vmem:[#allocation2 + $0x78] sm:$0xff]
    %v205 = vld [vmem:[%s2 + $0x1] sm:$0x1]
    %v206 = vlaneseq
    %v207 = vshrl.u32 %v206, 7
    %v208 = vsub.s32 0, %v207
    %v209 = vrot.slane %v205, %v208
    %210 = vmatprep.subr.mxu0 0.0
    %211 = vmatpush1.msra.mxu0 %v204
    %212 = vmatprep.subr.mxu0 0.0
    %213 = vmatpush1.msra.mxu0 %v203
    %214 = vmatprep.subr.mxu0 0.0
    %215 = vmatpush1.msra.mxu0 %v202
    %216 = vmatprep.subr.mxu0 0.0
    %217 = vmatpush1.msra.mxu0 %v201
    %218 = vmatprep.subr.mxu0 0.0
    %219 = vmatpush1.msra.mxu0 %v200
    %220 = vmatprep.subr.mxu0 0.0
    %221 = vmatpush1.msra.mxu0 %v199
    %222 = vmatprep.subr.mxu0 0.0
    %223 = vmatpush1.msra.mxu0 %v198
    %224 = vmatprep.subr.mxu0 0.0
    %225 = vmatpush1.msra.mxu0 %v197
    %226 = vmatprep.subr.mxu0 0.0
    %227 = vmatpush1.msra.mxu0 %v196
    %228 = vmatprep.subr.mxu0 0.0
    %229 = vmatpush1.msra.mxu0 %v195
    %230 = vmatprep.subr.mxu0 0.0
    %231 = vmatpush1.msra.mxu0 %v194
    %232 = vmatprep.subr.mxu0 0.0
    %233 = vmatpush1.msra.mxu0 %v193
    %234 = vmatprep.subr.mxu0 0.0
    %235 = vmatpush1.msra.mxu0 %v192
    %236 = vmatprep.subr.mxu0 0.0
    %237 = vmatpush1.msra.mxu0 %v191
    %238 = vmatprep.subr.mxu0 0.0
    %239 = vmatpush1.msra.mxu0 %v190
    %240 = vmatprep.subr.mxu0 0.0
    %241 = vmatpush1.msra.mxu0 %v189
    %242 = vmatprep.subr.mxu0 0.0
    %243 = vmatpush2.msra.mxu0 0.0
    %244 = vmatprep.subr.mxu0 0.0
    %245 = vmatpush2.msra.mxu0 0.0
    %246 = vmatprep.subr.mxu0 0.0
    %247 = vmatpush2.msra.mxu0 0.0
    %248 = vmatprep.subr.mxu0 0.0
    %249 = vmatpush2.msra.mxu0 0.0
    %250 = vmatprep.subr.mxu0 0.0
    %251 = vmatpush2.msra.mxu0 0.0
    %252 = vmatprep.subr.mxu0 0.0
    %253 = vmatpush2.msra.mxu0 0.0
    %254 = vmatprep.subr.mxu0 0.0
    %255 = vmatpush2.msra.mxu0 0.0
    %256 = vmatprep.subr.mxu0 0.0
    %257 = vmatpush2.msra.mxu0 0.0
    %258 = vmatprep.subr.mxu0 0.0
    %259 = vmatpush2.msra.mxu0 0.0
    %260 = vmatprep.subr.mxu0 0.0
    %261 = vmatpush2.msra.mxu0 0.0
    %262 = vmatprep.subr.mxu0 0.0
    %263 = vmatpush2.msra.mxu0 0.0
    %264 = vmatprep.subr.mxu0 0.0
    %265 = vmatpush2.msra.mxu0 0.0
    %266 = vmatprep.subr.mxu0 0.0
    %267 = vmatpush2.msra.mxu0 0.0
    %268 = vmatprep.subr.mxu0 0.0
    %269 = vmatpush2.msra.mxu0 0.0
    %270 = vmatprep.subr.mxu0 0.0
    %271 = vmatpush2.msra.mxu0 0.0
    %272 = vmatprep.subr.mxu0 0.0
    %273 = vmatpush2.msra.mxu0 0.0
    %274 = vmatprep.mubr.f32.mxu0 0.0
    %275 = vmatmul.mubr.f32.gmra.mxu0 %v171
    %v276 = vpop.f32.mrf.mxu0
    %v277 = vadd.f32 %v209, %v276
    %v278 = vpop.f32.mrf.mxu0
    %279 = vdwg.mxu0
    %v280 = vxor.u32 %v277, 2147483648
    %v281 = vmul.f32 %v280, 1.442695
    %v282 = vpow.pop %v281
    %v283 = vadd.f32 %v282, 1.0
    %v284 = vrcp.pop %v283
    %v285 = vmul.f32 1.0, %v284
    %v286 = vmul.f32 %v277, %v285
    %s287 = sshll.u32 %s172, 4
    %288 = dma.done %s177, %s287
    %s289 = scalar_lea.hbm %s3, 4096
    // Predicated region
    $region38: #{net_forward_pallas.1} parent=1 // pred_check
      _
    $region39: #{net_forward_pallas.1} parent=1 // pred_check_branch
      %291 = sbr.rel target = $region41
    $region40: #{net_forward_pallas.1} parent=1 // pred_region
      %292 = sst [smem:[#allocation10]] [#allocation15]
      %293 = sst [smem:[#allocation11]] [#allocation14]
    $region41: #{net_forward_pallas.1} parent=1 // pred_fallthru
      _
    %295 = shalt.err (0)
    %s297 = sshll.u32 [#allocation2], 4
    %s298 = int_to_ptr.vmem [resolvable:$true] %s297
    %300 = dma.hbm_to_vmem [thread:$0]  %s289, 2048, %s298, [#allocation3]
    %v301 = vld [vmem:[%s176] sm:$0xff]
    %v302 = vld [vmem:[%s176 + $0x8] sm:$0xff]
    %v303 = vld [vmem:[%s176 + $0x10] sm:$0xff]
    %v304 = vld [vmem:[%s176 + $0x18] sm:$0xff]
    %v305 = vld [vmem:[%s176 + $0x20] sm:$0xff]
    %v306 = vld [vmem:[%s176 + $0x28] sm:$0xff]
    %v307 = vld [vmem:[%s176 + $0x30] sm:$0xff]
    %v308 = vld [vmem:[%s176 + $0x38] sm:$0xff]
    %v309 = vld [vmem:[%s176 + $0x40] sm:$0xff]
    %v310 = vld [vmem:[%s176 + $0x48] sm:$0xff]
    %v311 = vld [vmem:[%s176 + $0x50] sm:$0xff]
    %v312 = vld [vmem:[%s176 + $0x58] sm:$0xff]
    %v313 = vld [vmem:[%s176 + $0x60] sm:$0xff]
    %v314 = vld [vmem:[%s176 + $0x68] sm:$0xff]
    %v315 = vld [vmem:[%s176 + $0x70] sm:$0xff]
    %v316 = vld [vmem:[%s176 + $0x78] sm:$0xff]
    %v317 = vld [vmem:[%s2 + $0x2] sm:$0x1]
    %v318 = vlaneseq
    %v319 = vshrl.u32 %v318, 7
    %v320 = vsub.s32 0, %v319
    %v321 = vrot.slane %v317, %v320
    %322 = vmatprep.subr.mxu0 0.0
    %323 = vmatpush1.msra.mxu0 %v316
    %324 = vmatprep.subr.mxu0 0.0
    %325 = vmatpush1.msra.mxu0 %v315
    %326 = vmatprep.subr.mxu0 0.0
    %327 = vmatpush1.msra.mxu0 %v314
    %328 = vmatprep.subr.mxu0 0.0
    %329 = vmatpush1.msra.mxu0 %v313
    %330 = vmatprep.subr.mxu0 0.0
    %331 = vmatpush1.msra.mxu0 %v312
    %332 = vmatprep.subr.mxu0 0.0
    %333 = vmatpush1.msra.mxu0 %v311
    %334 = vmatprep.subr.mxu0 0.0
    %335 = vmatpush1.msra.mxu0 %v310
    %336 = vmatprep.subr.mxu0 0.0
    %337 = vmatpush1.msra.mxu0 %v309
    %338 = vmatprep.subr.mxu0 0.0
    %339 = vmatpush1.msra.mxu0 %v308
    %340 = vmatprep.subr.mxu0 0.0
    %341 = vmatpush1.msra.mxu0 %v307
    %342 = vmatprep.subr.mxu0 0.0
    %343 = vmatpush1.msra.mxu0 %v306
    %344 = vmatprep.subr.mxu0 0.0
    %345 = vmatpush1.msra.mxu0 %v305
    %346 = vmatprep.subr.mxu0 0.0
    %347 = vmatpush1.msra.mxu0 %v304
    %348 = vmatprep.subr.mxu0 0.0
    %349 = vmatpush1.msra.mxu0 %v303
    %350 = vmatprep.subr.mxu0 0.0
    %351 = vmatpush1.msra.mxu0 %v302
    %352 = vmatprep.subr.mxu0 0.0
    %353 = vmatpush1.msra.mxu0 %v301
    %354 = vmatprep.subr.mxu0 0.0
    %355 = vmatpush2.msra.mxu0 0.0
    %356 = vmatprep.subr.mxu0 0.0
    %357 = vmatpush2.msra.mxu0 0.0
    %358 = vmatprep.subr.mxu0 0.0
    %359 = vmatpush2.msra.mxu0 0.0
    %360 = vmatprep.subr.mxu0 0.0
    %361 = vmatpush2.msra.mxu0 0.0
    %362 = vmatprep.subr.mxu0 0.0
    %363 = vmatpush2.msra.mxu0 0.0
    %364 = vmatprep.subr.mxu0 0.0
    %365 = vmatpush2.msra.mxu0 0.0
    %366 = vmatprep.subr.mxu0 0.0
    %367 = vmatpush2.msra.mxu0 0.0
    %368 = vmatprep.subr.mxu0 0.0
    %369 = vmatpush2.msra.mxu0 0.0
    %370 = vmatprep.subr.mxu0 0.0
    %371 = vmatpush2.msra.mxu0 0.0
    %372 = vmatprep.subr.mxu0 0.0
    %373 = vmatpush2.msra.mxu0 0.0
    %374 = vmatprep.subr.mxu0 0.0
    %375 = vmatpush2.msra.mxu0 0.0
    %376 = vmatprep.subr.mxu0 0.0
    %377 = vmatpush2.msra.mxu0 0.0
    %378 = vmatprep.subr.mxu0 0.0
    %379 = vmatpush2.msra.mxu0 0.0
    %380 = vmatprep.subr.mxu0 0.0
    %381 = vmatpush2.msra.mxu0 0.0
    %382 = vmatprep.subr.mxu0 0.0
    %383 = vmatpush2.msra.mxu0 0.0
    %384 = vmatprep.subr.mxu0 0.0
    %385 = vmatpush2.msra.mxu0 0.0
    %386 = vmatprep.mubr.f32.mxu0 0.0
    %387 = vmatmul.mubr.f32.gmra.mxu0 %v286
    %v388 = vpop.f32.mrf.mxu0
    %v389 = vadd.f32 %v321, %v388
    %v390 = vpop.f32.mrf.mxu0
    %391 = vdwg.mxu0
    %v392 = vadd.f32 %v149, %v389
    %v393 = vxor.u32 %v392, 2147483648
    %v394 = vmul.f32 %v393, 1.442695
    %v395 = vpow.pop %v394
    %v396 = vadd.f32 %v395, 1.0
    %v397 = vrcp.pop %v396
    %v398 = vmul.f32 1.0, %v397
    %v399 = vmul.f32 %v392, %v398
    %v400 = vrot.slane %v399, 4
    %v401 = vadd.f32 %v399, %v400
    %v402 = vrot.slane %v401, 2
    %v403 = vadd.f32 %v401, %v402
    %v404 = vrot.slane %v403, 1
    %v405 = vadd.f32 %v403, %v404
    %v406 = vmul.f32 %v405, %v158
    %v407 = vsub.f32 %v399, %v406
    %v408 = vmul.f32 %v407, %v407
    %v409 = vrot.slane %v408, 4
    %v410 = vadd.f32 %v408, %v409
    %v411 = vrot.slane %v410, 2
    %v412 = vadd.f32 %v410, %v411
    %v413 = vrot.slane %v412, 1
    %v414 = vadd.f32 %v412, %v413
    %v415 = vmul.f32 %v414, %v158
    %v416 = vadd.f32 %v415, 1e-05
    %v417 = vrsqrt.pop %v416
    %v418 = vmul.f32 %v407, %v417
    %s419 = sshll.u32 %s172, 4
    %420 = dma.done [#allocation3], %s419
    %s421 = scalar_lea.hbm %s3, 6144
    // Predicated region
    $region42: #{net_forward_pallas.1} parent=1 // pred_check
      _
    $region43: #{net_forward_pallas.1} parent=1 // pred_check_branch
      %423 = sbr.rel target = $region45
    $region44: #{net_forward_pallas.1} parent=1 // pred_region
      %424 = sst [smem:[#allocation10]] [#allocation17]
      %425 = sst [smem:[#allocation11]] [#allocation16]
    $region45: #{net_forward_pallas.1} parent=1 // pred_fallthru
      _
    %427 = shalt.err (0)
    %s429 = sshll.u32 %s176, 4
    %s430 = int_to_ptr.vmem [resolvable:$true] %s429
    %432 = dma.hbm_to_vmem [thread:$0]  %s421, 2048, %s430, %s177
    %v433 = vld [vmem:[#allocation2] sm:$0xff]
    %v434 = vld [vmem:[#allocation2 + $0x8] sm:$0xff]
    %v435 = vld [vmem:[#allocation2 + $0x10] sm:$0xff]
    %v436 = vld [vmem:[#allocation2 + $0x18] sm:$0xff]
    %v437 = vld [vmem:[#allocation2 + $0x20] sm:$0xff]
    %v438 = vld [vmem:[#allocation2 + $0x28] sm:$0xff]
    %v439 = vld [vmem:[#allocation2 + $0x30] sm:$0xff]
    %v440 = vld [vmem:[#allocation2 + $0x38] sm:$0xff]
    %v441 = vld [vmem:[#allocation2 + $0x40] sm:$0xff]
    %v442 = vld [vmem:[#allocation2 + $0x48] sm:$0xff]
    %v443 = vld [vmem:[#allocation2 + $0x50] sm:$0xff]
    %v444 = vld [vmem:[#allocation2 + $0x58] sm:$0xff]
    %v445 = vld [vmem:[#allocation2 + $0x60] sm:$0xff]
    %v446 = vld [vmem:[#allocation2 + $0x68] sm:$0xff]
    %v447 = vld [vmem:[#allocation2 + $0x70] sm:$0xff]
    %v448 = vld [vmem:[#allocation2 + $0x78] sm:$0xff]
    %v449 = vld [vmem:[%s2 + $0x3] sm:$0x1]
    %v450 = vlaneseq
    %v451 = vshrl.u32 %v450, 7
    %v452 = vsub.s32 0, %v451
    %v453 = vrot.slane %v449, %v452
    %454 = vmatprep.subr.mxu0 0.0
    %455 = vmatpush1.msra.mxu0 %v448
    %456 = vmatprep.subr.mxu0 0.0
    %457 = vmatpush1.msra.mxu0 %v447
    %458 = vmatprep.subr.mxu0 0.0
    %459 = vmatpush1.msra.mxu0 %v446
    %460 = vmatprep.subr.mxu0 0.0
    %461 = vmatpush1.msra.mxu0 %v445
    %462 = vmatprep.subr.mxu0 0.0
    %463 = vmatpush1.msra.mxu0 %v444
    %464 = vmatprep.subr.mxu0 0.0
    %465 = vmatpush1.msra.mxu0 %v443
    %466 = vmatprep.subr.mxu0 0.0
    %467 = vmatpush1.msra.mxu0 %v442
    %468 = vmatprep.subr.mxu0 0.0
    %469 = vmatpush1.msra.mxu0 %v441
    %470 = vmatprep.subr.mxu0 0.0
    %471 = vmatpush1.msra.mxu0 %v440
    %472 = vmatprep.subr.mxu0 0.0
    %473 = vmatpush1.msra.mxu0 %v439
    %474 = vmatprep.subr.mxu0 0.0
    %475 = vmatpush1.msra.mxu0 %v438
    %476 = vmatprep.subr.mxu0 0.0
    %477 = vmatpush1.msra.mxu0 %v437
    %478 = vmatprep.subr.mxu0 0.0
    %479 = vmatpush1.msra.mxu0 %v436
    %480 = vmatprep.subr.mxu0 0.0
    %481 = vmatpush1.msra.mxu0 %v435
    %482 = vmatprep.subr.mxu0 0.0
    %483 = vmatpush1.msra.mxu0 %v434
    %484 = vmatprep.subr.mxu0 0.0
    %485 = vmatpush1.msra.mxu0 %v433
    %486 = vmatprep.subr.mxu0 0.0
    %487 = vmatpush2.msra.mxu0 0.0
    %488 = vmatprep.subr.mxu0 0.0
    %489 = vmatpush2.msra.mxu0 0.0
    %490 = vmatprep.subr.mxu0 0.0
    %491 = vmatpush2.msra.mxu0 0.0
    %492 = vmatprep.subr.mxu0 0.0
    %493 = vmatpush2.msra.mxu0 0.0
    %494 = vmatprep.subr.mxu0 0.0
    %495 = vmatpush2.msra.mxu0 0.0
    %496 = vmatprep.subr.mxu0 0.0
    %497 = vmatpush2.msra.mxu0 0.0
    %498 = vmatprep.subr.mxu0 0.0
    %499 = vmatpush2.msra.mxu0 0.0
    %500 = vmatprep.subr.mxu0 0.0
    %501 = vmatpush2.msra.mxu0 0.0
    %502 = vmatprep.subr.mxu0 0.0
    %503 = vmatpush2.msra.mxu0 0.0
    %504 = vmatprep.subr.mxu0 0.0
    %505 = vmatpush2.msra.mxu0 0.0
    %506 = vmatprep.subr.mxu0 0.0
    %507 = vmatpush2.msra.mxu0 0.0
    %508 = vmatprep.subr.mxu0 0.0
    %509 = vmatpush2.msra.mxu0 0.0
    %510 = vmatprep.subr.mxu0 0.0
    %511 = vmatpush2.msra.mxu0 0.0
    %512 = vmatprep.subr.mxu0 0.0
    %513 = vmatpush2.msra.mxu0 0.0
    %514 = vmatprep.subr.mxu0 0.0
    %515 = vmatpush2.msra.mxu0 0.0
    %516 = vmatprep.subr.mxu0 0.0
    %517 = vmatpush2.msra.mxu0 0.0
    %518 = vmatprep.mubr.f32.mxu0 0.0
    %519 = vmatmul.mubr.f32.gmra.mxu0 %v418
    %v520 = vpop.f32.mrf.mxu0
    %v521 = vadd.f32 %v453, %v520
    %v522 = vpop.f32.mrf.mxu0
    %523 = vdwg.mxu0
    %v524 = vxor.u32 %v521, 2147483648
    %v525 = vmul.f32 %v524, 1.442695
    %v526 = vpow.pop %v525
    %v527 = vadd.f32 %v526, 1.0
    %v528 = vrcp.pop %v527
    %v529 = vmul.f32 1.0, %v528
    %v530 = vmul.f32 %v521, %v529
    %s531 = sshll.u32 %s172, 4
    %532 = dma.done %s177, %s531
    %v533 = vld [vmem:[%s176] sm:$0xff]
    %v534 = vld [vmem:[%s176 + $0x8] sm:$0xff]
    %v535 = vld [vmem:[%s176 + $0x10] sm:$0xff]
    %v536 = vld [vmem:[%s176 + $0x18] sm:$0xff]
    %v537 = vld [vmem:[%s176 + $0x20] sm:$0xff]
    %v538 = vld [vmem:[%s176 + $0x28] sm:$0xff]
    %v539 = vld [vmem:[%s176 + $0x30] sm:$0xff]
    %v540 = vld [vmem:[%s176 + $0x38] sm:$0xff]
    %v541 = vld [vmem:[%s176 + $0x40] sm:$0xff]
    %v542 = vld [vmem:[%s176 + $0x48] sm:$0xff]
    %v543 = vld [vmem:[%s176 + $0x50] sm:$0xff]
    %v544 = vld [vmem:[%s176 + $0x58] sm:$0xff]
    %v545 = vld [vmem:[%s176 + $0x60] sm:$0xff]
    %v546 = vld [vmem:[%s176 + $0x68] sm:$0xff]
    %v547 = vld [vmem:[%s176 + $0x70] sm:$0xff]
    %v548 = vld [vmem:[%s176 + $0x78] sm:$0xff]
    %v549 = vld [vmem:[%s2 + $0x4] sm:$0x1]
    %v550 = vlaneseq
    %v551 = vshrl.u32 %v550, 7
    %v552 = vsub.s32 0, %v551
    %v553 = vrot.slane %v549, %v552
    %554 = vmatprep.subr.mxu0 0.0
    %555 = vmatpush1.msra.mxu0 %v548
    %556 = vmatprep.subr.mxu0 0.0
    %557 = vmatpush1.msra.mxu0 %v547
    %558 = vmatprep.subr.mxu0 0.0
    %559 = vmatpush1.msra.mxu0 %v546
    %560 = vmatprep.subr.mxu0 0.0
    %561 = vmatpush1.msra.mxu0 %v545
    %562 = vmatprep.subr.mxu0 0.0
    %563 = vmatpush1.msra.mxu0 %v544
    %564 = vmatprep.subr.mxu0 0.0
    %565 = vmatpush1.msra.mxu0 %v543
    %566 = vmatprep.subr.mxu0 0.0
    %567 = vmatpush1.msra.mxu0 %v542
    %568 = vmatprep.subr.mxu0 0.0
    %569 = vmatpush1.msra.mxu0 %v541
    %570 = vmatprep.subr.mxu0 0.0
    %571 = vmatpush1.msra.mxu0 %v540
    %572 = vmatprep.subr.mxu0 0.0
    %573 = vmatpush1.msra.mxu0 %v539
    %574 = vmatprep.subr.mxu0 0.0
    %575 = vmatpush1.msra.mxu0 %v538
    %576 = vmatprep.subr.mxu0 0.0
    %577 = vmatpush1.msra.mxu0 %v537
    %578 = vmatprep.subr.mxu0 0.0
    %579 = vmatpush1.msra.mxu0 %v536
    %580 = vmatprep.subr.mxu0 0.0
    %581 = vmatpush1.msra.mxu0 %v535
    %582 = vmatprep.subr.mxu0 0.0
    %583 = vmatpush1.msra.mxu0 %v534
    %584 = vmatprep.subr.mxu0 0.0
    %585 = vmatpush1.msra.mxu0 %v533
    %586 = vmatprep.subr.mxu0 0.0
    %587 = vmatpush2.msra.mxu0 0.0
    %588 = vmatprep.subr.mxu0 0.0
    %589 = vmatpush2.msra.mxu0 0.0
    %590 = vmatprep.subr.mxu0 0.0
    %591 = vmatpush2.msra.mxu0 0.0
    %592 = vmatprep.subr.mxu0 0.0
    %593 = vmatpush2.msra.mxu0 0.0
    %594 = vmatprep.subr.mxu0 0.0
    %595 = vmatpush2.msra.mxu0 0.0
    %596 = vmatprep.subr.mxu0 0.0
    %597 = vmatpush2.msra.mxu0 0.0
    %598 = vmatprep.subr.mxu0 0.0
    %599 = vmatpush2.msra.mxu0 0.0
    %600 = vmatprep.subr.mxu0 0.0
    %601 = vmatpush2.msra.mxu0 0.0
    %602 = vmatprep.subr.mxu0 0.0
    %603 = vmatpush2.msra.mxu0 0.0
    %604 = vmatprep.subr.mxu0 0.0
    %605 = vmatpush2.msra.mxu0 0.0
    %606 = vmatprep.subr.mxu0 0.0
    %607 = vmatpush2.msra.mxu0 0.0
    %608 = vmatprep.subr.mxu0 0.0
    %609 = vmatpush2.msra.mxu0 0.0
    %610 = vmatprep.subr.mxu0 0.0
    %611 = vmatpush2.msra.mxu0 0.0
    %612 = vmatprep.subr.mxu0 0.0
    %613 = vmatpush2.msra.mxu0 0.0
    %614 = vmatprep.subr.mxu0 0.0
    %615 = vmatpush2.msra.mxu0 0.0
    %616 = vmatprep.subr.mxu0 0.0
    %617 = vmatpush2.msra.mxu0 0.0
    %618 = vmatprep.mubr.f32.mxu0 0.0
    %619 = vmatmul.mubr.f32.gmra.mxu0 %v530
    %v620 = vpop.f32.mrf.mxu0
    %v621 = vadd.f32 %v553, %v620
    %v622 = vpop.f32.mrf.mxu0
    %623 = vdwg.mxu0
    %v624 = vadd.f32 %v399, %v621
    %v625 = vxor.u32 %v624, 2147483648
    %v626 = vmul.f32 %v625, 1.442695
    %v627 = vpow.pop %v626
    %v628 = vadd.f32 %v627, 1.0
    %v629 = vrcp.pop %v628
    %v630 = vmul.f32 1.0, %v629
    %v631 = vmul.f32 %v624, %v630
    %v632 = vld [vmem:[#allocation6] sm:$0xff]
    %v633 = vld [vmem:[#allocation6 + $0x8] sm:$0xff]
    %v634 = vld [vmem:[#allocation6 + $0x10] sm:$0xff]
    %v635 = vld [vmem:[#allocation6 + $0x18] sm:$0xff]
    %v636 = vld [vmem:[#allocation6 + $0x20] sm:$0xff]
    %v637 = vld [vmem:[#allocation6 + $0x28] sm:$0xff]
    %v638 = vld [vmem:[#allocation6 + $0x30] sm:$0xff]
    %v639 = vld [vmem:[#allocation6 + $0x38] sm:$0xff]
    %v640 = vld [vmem:[#allocation6 + $0x40] sm:$0xff]
    %v641 = vld [vmem:[#allocation6 + $0x48] sm:$0xff]
    %v642 = vld [vmem:[#allocation6 + $0x50] sm:$0xff]
    %v643 = vld [vmem:[#allocation6 + $0x58] sm:$0xff]
    %v644 = vld [vmem:[#allocation6 + $0x60] sm:$0xff]
    %v645 = vld [vmem:[#allocation6 + $0x68] sm:$0xff]
    %v646 = vld [vmem:[#allocation6 + $0x70] sm:$0xff]
    %v647 = vld [vmem:[#allocation6 + $0x78] sm:$0xff]
    %v648 = vld [vmem:[%s5] sm:$0x1]
    %v650 = vlaneseq
    %v651 = vshrl.u32 %v650, 7
    %v652 = vsub.s32 0, %v651
    %v653 = vrot.slane %v648, %v652
    %655 = vmatprep.subr.mxu0 0.0
    %656 = vmatpush1.msra.mxu0 %v647
    %657 = vmatprep.subr.mxu0 0.0
    %658 = vmatpush1.msra.mxu0 %v646
    %659 = vmatprep.subr.mxu0 0.0
    %660 = vmatpush1.msra.mxu0 %v645
    %661 = vmatprep.subr.mxu0 0.0
    %662 = vmatpush1.msra.mxu0 %v644
    %663 = vmatprep.subr.mxu0 0.0
    %664 = vmatpush1.msra.mxu0 %v643
    %665 = vmatprep.subr.mxu0 0.0
    %666 = vmatpush1.msra.mxu0 %v642
    %667 = vmatprep.subr.mxu0 0.0
    %668 = vmatpush1.msra.mxu0 %v641
    %669 = vmatprep.subr.mxu0 0.0
    %670 = vmatpush1.msra.mxu0 %v640
    %671 = vmatprep.subr.mxu0 0.0
    %672 = vmatpush1.msra.mxu0 %v639
    %673 = vmatprep.subr.mxu0 0.0
    %674 = vmatpush1.msra.mxu0 %v638
    %675 = vmatprep.subr.mxu0 0.0
    %676 = vmatpush1.msra.mxu0 %v637
    %677 = vmatprep.subr.mxu0 0.0
    %678 = vmatpush1.msra.mxu0 %v636
    %679 = vmatprep.subr.mxu0 0.0
    %680 = vmatpush1.msra.mxu0 %v635
    %681 = vmatprep.subr.mxu0 0.0
    %682 = vmatpush1.msra.mxu0 %v634
    %683 = vmatprep.subr.mxu0 0.0
    %684 = vmatpush1.msra.mxu0 %v633
    %685 = vmatprep.subr.mxu0 0.0
    %686 = vmatpush1.msra.mxu0 %v632
    %687 = vmatprep.subr.mxu0 0.0
    %688 = vmatpush2.msra.mxu0 0.0
    %689 = vmatprep.subr.mxu0 0.0
    %690 = vmatpush2.msra.mxu0 0.0
    %691 = vmatprep.subr.mxu0 0.0
    %692 = vmatpush2.msra.mxu0 0.0
    %693 = vmatprep.subr.mxu0 0.0
    %694 = vmatpush2.msra.mxu0 0.0
    %695 = vmatprep.subr.mxu0 0.0
    %696 = vmatpush2.msra.mxu0 0.0
    %697 = vmatprep.subr.mxu0 0.0
    %698 = vmatpush2.msra.mxu0 0.0
    %699 = vmatprep.subr.mxu0 0.0
    %700 = vmatpush2.msra.mxu0 0.0
    %701 = vmatprep.subr.mxu0 0.0
    %702 = vmatpush2.msra.mxu0 0.0
    %703 = vmatprep.subr.mxu0 0.0
    %704 = vmatpush2.msra.mxu0 0.0
    %705 = vmatprep.subr.mxu0 0.0
    %706 = vmatpush2.msra.mxu0 0.0
    %707 = vmatprep.subr.mxu0 0.0
    %708 = vmatpush2.msra.mxu0 0.0
    %709 = vmatprep.subr.mxu0 0.0
    %710 = vmatpush2.msra.mxu0 0.0
    %711 = vmatprep.subr.mxu0 0.0
    %712 = vmatpush2.msra.mxu0 0.0
    %713 = vmatprep.subr.mxu0 0.0
    %714 = vmatpush2.msra.mxu0 0.0
    %715 = vmatprep.subr.mxu0 0.0
    %716 = vmatpush2.msra.mxu0 0.0
    %717 = vmatprep.subr.mxu0 0.0
    %718 = vmatpush2.msra.mxu0 0.0
    %719 = vmatprep.mubr.f32.mxu0 0.0
    %720 = vmatmul.mubr.f32.gmra.mxu0 %v631
    %v721 = vpop.f32.mrf.mxu0
    %v722 = vadd.f32 %v653, %v721
    %v723 = vpop.f32.mrf.mxu0
    %724 = vdwg.mxu0
    %725 = vst [vmem:[%s6] sm:$0xff] %v722
    // Predicated region
    $region46: #{net_forward_pallas.1} parent=1 // pred_check
      _
    $region47: #{net_forward_pallas.1} parent=1 // pred_check_branch
      %727 = sbr.rel (0) target = $region49
    $region48: #{net_forward_pallas.1} parent=1 // pred_region
      _
    $region49: #{net_forward_pallas.1} parent=1 // pred_fallthru
      _
    // Predicated region
    $region50: #{net_forward_pallas.1} parent=1 // pred_check
      _
    $region51: #{net_forward_pallas.1} parent=1 // pred_check_branch
      %729 = sbr.rel (0) target = $region53
    $region52: #{net_forward_pallas.1} parent=1 // pred_region
      _
    $region53: #{net_forward_pallas.1} parent=1 // pred_fallthru
      _
    %730 = vsyncpa [#allocation5], 1
    %731 = vsyncpa [#allocation7], 1
  %732 = vsyncmov [#allocation3]
  %s733 = vpop.sfrf %732
  %p734 = scmp.eq.s32.totalorder %s733, 0
  %p735 = pneg %p734
  %737 = shalt.err (%p735)
  %s738 = scalar_lea.sflag [#allocation3], 1
  %739 = vsyncmov %s738
  %s740 = vpop.sfrf %739
  %p741 = scmp.eq.s32.totalorder %s740, 0
  %p742 = pneg %p741
  %744 = shalt.err (%p742)

</llo_original>
